<compile_context>
chip_gen: v5e
topology: v5e:2x2
jax: 0.10.0
libtpu: 0.0.40
codegen_flags: <defaults>
</compile_context>

<pallas_src>
import functools

import jax
import jax.numpy as jnp
from jax.experimental import pallas as pl
from jax.experimental.pallas import tpu as pltpu

_LANE = 128
_FAST_PATH_MAX_BYTES = 1 << 20   # below this, any kernel launch is pure overhead
_MIN_CHUNK_BYTES = 1 << 20       # don't split DMAs finer than ~1 MiB
_MAX_CHUNKS = 8                  # max concurrent HBM->HBM DMAs (static)


def _chunk_rows(rows: int, bytes_per_row: int):
    """Static (row_start, row_count) chunks covering [0, rows)."""
    total_bytes = rows * bytes_per_row
    n = max(1, min(_MAX_CHUNKS, rows, total_bytes // _MIN_CHUNK_BYTES))
    edges = [(i * rows) // n for i in range(n + 1)]
    return tuple(
        (edges[i], edges[i + 1] - edges[i])
        for i in range(n)
        if edges[i + 1] > edges[i]
    )


def _dma_identity_kernel(chunks, x_hbm, o_hbm, sems):
    """Copy x -> o entirely with HBM->HBM DMAs (no VMEM staging).

    `chunks` is a static tuple of (row_start, row_count).  All DMAs are issued
    first (they run concurrently on the DMA engines), then all are waited.
    """
    copies = []
    for c, (start, size) in enumerate(chunks):
        cp = pltpu.make_async_copy(
            x_hbm.at[pl.ds(start, size), :],
            o_hbm.at[pl.ds(start, size), :],
            sems.at[c],
        )
        cp.start()
        copies.append(cp)
    for cp in copies:
        cp.wait()


def _pallas_identity_copy(batch: jax.Array) -> jax.Array:
    """Explicit Pallas identity: chunked HBM->HBM DMA copy of `batch`."""
    total = batch.size
    if total == 0:
        return batch
    itemsize = jnp.dtype(batch.dtype).itemsize

    # 2-D, row-major-contiguous view purely for chunking convenience.  The
    # copy is pure DMA (no VMEM tiles), so there is no (8,128) / sublane
    # constraint on this shape and no masked-store concern for odd sizes.
    if total % _LANE == 0:
        x2 = batch.reshape(total // _LANE, _LANE)
    else:
        x2 = batch.reshape(1, total)
    rows, cols = x2.shape

    chunks = _chunk_rows(rows, cols * itemsize)

    out2 = pl.pallas_call(
        functools.partial(_dma_identity_kernel, chunks),
        out_shape=jax.ShapeDtypeStruct(x2.shape, x2.dtype),
        in_specs=[pl.BlockSpec(memory_space=pl.ANY)],
        out_specs=pl.BlockSpec(memory_space=pl.ANY),
        scratch_shapes=[pltpu.SemaphoreType.DMA((len(chunks),))],
        cost_estimate=pl.CostEstimate(
            flops=0,
            transcendentals=0,
            bytes_accessed=2 * total * itemsize,
        ),
    )(x2)
    return out2.reshape(batch.shape)


def no_sequence_model(batch: jax.Array, *, force_kernel: bool = False) -> jax.Array:
    """Pallas implementation of NoSequenceModel.forward (identity).

    The cheapest correct implementation is literally `return batch` (zero HBM
    traffic) — used here for small inputs and recommended for the real
    integration path at any size (or `input_output_aliases` + donation under
    jit).  `force_kernel=True` routes through the explicit HBM->HBM DMA copy.
    """
    nbytes = batch.size * jnp.dtype(batch.dtype).itemsize
    if not force_kernel and nbytes <= _FAST_PATH_MAX_BYTES:
        return batch
    return _pallas_identity_copy(batch)


if __name__ == "__main__":
    key = jax.random.PRNGKey(0)
    # Shape consistent with the module's use in the recognition pipeline:
    # (batch, seq, hidden) = (2, 8, 32).  No parameters to initialize.
    x = jax.random.normal(key, (2, 8, 32), dtype=jnp.float32)

    # 1) Real integration path: identity fast path (no kernel, no HBM traffic).
    y_fast = jax.block_until_ready(no_sequence_model(x))
    assert y_fast.shape == x.shape and y_fast.dtype == x.dtype
    assert bool(jnp.all(y_fast == x))

    # 2) Kernel path (forced) on the small input: single HBM->HBM DMA.
    y = jax.block_until_ready(no_sequence_model(x, force_kernel=True))
    assert y.shape == x.shape and y.dtype == x.dtype
    assert bool(jnp.all(y == x))

    # 3) Kernel path on a larger lane-aligned tensor (4 MiB) to exercise
    #    multiple concurrent chunked DMAs.
    x_big = jax.random.normal(jax.random.PRNGKey(1), (8, 256, 512), dtype=jnp.float32)
    y_big = jax.block_until_ready(no_sequence_model(x_big, force_kernel=True))
    assert y_big.shape == x_big.shape and y_big.dtype == x_big.dtype
    assert bool(jnp.all(y_big == x_big))

    # 4) Kernel path on a non-128-divisible size (previous version's risky
    #    fallback) — harmless here since the copy never touches VMEM.
    x_odd = jax.random.normal(jax.random.PRNGKey(2), (3, 5, 7), dtype=jnp.float32)
    y_odd = jax.block_until_ready(no_sequence_model(x_odd, force_kernel=True))
    assert y_odd.shape == x_odd.shape and bool(jnp.all(y_odd == x_odd))

    print("KERNEL_OK")
</pallas_src>

<mosaic_0001>
module attributes {stable_mosaic.version = 11 : i64} {
  func.func @_dma_identity_kernel(%arg0: memref<4x128xf32, #tpu.memory_space<any>>, %arg1: memref<4x128xf32, #tpu.memory_space<any>>, %arg2: memref<1x!tpu.dma_semaphore, #tpu.memory_space<semaphore_mem>>) attributes {dimension_semantics = [], scalar_prefetch = 0 : i64, scratch_operands = 1 : i64, tpu.core_type = #tpu.core_type<tc>} {
    %c0_i32 = arith.constant 0 : i32
    %c0_i32_0 = arith.constant 0 : i32
    %c0_i32_1 = arith.constant 0 : i32
    %0 = tpu.memref_slice %arg0[%c0_i32_0, %c0_i32_1] : memref<4x128xf32, #tpu.memory_space<any>> -> memref<4x128xf32, #tpu.memory_space<any>>
    %c0_i32_2 = arith.constant 0 : i32
    %c0_i32_3 = arith.constant 0 : i32
    %1 = tpu.memref_slice %arg1[%c0_i32_2, %c0_i32_3] : memref<4x128xf32, #tpu.memory_space<any>> -> memref<4x128xf32, #tpu.memory_space<any>>
    %2 = tpu.memref_slice %arg2[%c0_i32] : memref<1x!tpu.dma_semaphore, #tpu.memory_space<semaphore_mem>> -> memref<1x!tpu.dma_semaphore, #tpu.memory_space<semaphore_mem>>
    %3 = tpu.memref_squeeze %2 : memref<1x!tpu.dma_semaphore, #tpu.memory_space<semaphore_mem>> -> memref<!tpu.dma_semaphore, #tpu.memory_space<semaphore_mem>>
    tpu.enqueue_dma source(%0 : memref<4x128xf32, #tpu.memory_space<any>>) target(%1 : memref<4x128xf32, #tpu.memory_space<any>>) target_semaphore(%3 : memref<!tpu.dma_semaphore, #tpu.memory_space<semaphore_mem>>)
    %c0_i32_4 = arith.constant 0 : i32
    %c0_i32_5 = arith.constant 0 : i32
    %c0_i32_6 = arith.constant 0 : i32
    %4 = tpu.memref_slice %arg0[%c0_i32_5, %c0_i32_6] : memref<4x128xf32, #tpu.memory_space<any>> -> memref<4x128xf32, #tpu.memory_space<any>>
    %c0_i32_7 = arith.constant 0 : i32
    %c0_i32_8 = arith.constant 0 : i32
    %5 = tpu.memref_slice %arg1[%c0_i32_7, %c0_i32_8] : memref<4x128xf32, #tpu.memory_space<any>> -> memref<4x128xf32, #tpu.memory_space<any>>
    %6 = tpu.memref_slice %arg2[%c0_i32_4] : memref<1x!tpu.dma_semaphore, #tpu.memory_space<semaphore_mem>> -> memref<1x!tpu.dma_semaphore, #tpu.memory_space<semaphore_mem>>
    %7 = tpu.memref_squeeze %6 : memref<1x!tpu.dma_semaphore, #tpu.memory_space<semaphore_mem>> -> memref<!tpu.dma_semaphore, #tpu.memory_space<semaphore_mem>>
    tpu.wait_dma2 semaphore(%7 : memref<!tpu.dma_semaphore, #tpu.memory_space<semaphore_mem>>) src(%4 : memref<4x128xf32, #tpu.memory_space<any>>) dst(%5 : memref<4x128xf32, #tpu.memory_space<any>>)
    return
  }
}

</mosaic_0001>

<llo_original>
// kernel: tpu_custom_call.1
$region0: #{tpu_custom_call.1}
  #allocation0 [shape = 'u32[]', space=smem, size = 0x4, offset = 0x4, fixed_abs, tag = 'smem constant byte address 0x4 - core index']
  #allocation1 [shape = 'u32[72,128]{1,0:T(1,128)}', space=vmem, size = 0x9000, scoped, tag = 'internal scratch']
  #allocation2 [shape = 's32[1]{0}', space=sflag, size = 0x4, scoped, tag = 'scratch operand']
  #allocation3 [shape = 's32[]', space=sflag, size = 0x4, offset = 0, fixed_abs, tag = 'sflag constant byte address 0x0 - dummy sync flag']
  #allocation4 [shape = 'u32[0]{0}', space=smem, size = 0, offset = 0, fixed_abs, tag = 'smem constant byte address 0x0 - null']
  %s0 = inlined_call_operand.hbm [shape: f32[4,128], index: 0, kind: input, shape index: {}]
  %s1 = inlined_call_operand.hbm [shape: f32[4,128], index: 1, kind: output, shape index: {}]
  %s2 = sld [smem:[#allocation0]]
  $region2: #{tpu_custom_call.1} parent=0
    _
  %s4 = ssub.s32 1, %s2
  %s5 = scalar_select 0, %s4, %s2
  %s7 = sshll.u32 1, 14
  %s8 = sxor.u32 4294967295, %s7
  %s10 = sshll.u32 %s0, 4
  %s11 = int_to_ptr.hbm [resolvable:$true] %s10
  %s12 = sshll.u32 %s1, 4
  %s13 = int_to_ptr.hbm [resolvable:$true] %s12
  %16 = dma.general %s11, 64, %s13, [#allocation2], [#allocation3], [#allocation4], 0, 0
  %s17 = smul.u32 4, 1
  %s18 = sshll.u32 %s17, 4
  %19 = dma.done [#allocation2], %s18
  %20 = vsyncmov [#allocation2]
  %s21 = vpop.sfrf %20
  %p22 = scmp.eq.s32.totalorder %s21, 0
  %p23 = pneg %p22
  %25 = shalt.err (%p23)

</llo_original>
